<compile_context>
chip_gen: v5e
topology: v5e:2x2
jax: 0.10.0
libtpu: 0.0.40
codegen_flags: <defaults>
</compile_context>

<pallas_src>
import jax
import jax.numpy as jnp
from jax.experimental import pallas as pl
from jax.experimental.pallas import tpu as pltpu


def _round_up(a, m):
    return (a + m - 1) // m * m


def _make_ngamoe_kernel(nh):
    # Row layout inside the stacked per-feature-block "rows" operand.
    r_w1n, r_b1n, r_w1e, r_b1e = 0, 1, 2, 3
    r_bhn0 = 4
    r_bhe0 = 4 + nh
    r_bfn = 4 + 2 * nh
    # Matrix layout inside the stacked "mats" operand.
    m_hn0 = 0
    m_fn = nh
    m_he0 = nh + 1

    def kernel(xrep_ref, rows_ref, mats_ref, wfer_ref, bfer_ref,
               a_ref, sel_ref, o_ref):
        fb = pl.program_id(1)                 # feature-block (reduction) index

        @pl.when(fb == 0)
        def _():
            o_ref[...] = jnp.zeros_like(o_ref)

        def mm(a, b):
            return jnp.dot(a, b, preferred_element_type=jnp.float32)

        def row(i):                           # (1, F*W), broadcasts over batch rows
            return rows_ref[i:i + 1, :]

        xr = xrep_ref[...]                    # (TB, F*W): x columns repeated W times

        # --- NAM branch: Linear(1,W)+ReLU on the VPU, then block-diag MXU layers.
        h = jnp.maximum(xr * row(r_w1n) + row(r_b1n), 0.0)
        for l in range(nh):
            h = jnp.maximum(mm(h, mats_ref[m_hn0 + l]) + row(r_bhn0 + l), 0.0)
        h = jnp.maximum(mm(h, mats_ref[m_fn]) + row(r_bfn), 0.0)        # (TB, F*W)

        # --- Expert branch.  Final Linear(W,k) is pre-replicated O times along its
        #     columns, so `g_tiled` is the gating already tiled over the output dim.
        g = jnp.maximum(xr * row(r_w1e) + row(r_b1e), 0.0)
        for l in range(nh):
            g = jnp.maximum(mm(g, mats_ref[m_he0 + l]) + row(r_bhe0 + l), 0.0)
        g_tiled = jnp.maximum(mm(g, wfer_ref[...]) + bfer_ref[...], 0.0)  # (TB, O*F*k)

        # --- SoftSelect + per-feature contraction, all packed features at once:
        #     contrib[b,o] = sum_{f,w,j} A[o,w,j] * g_f[b,j] * h_f[b,w]
        t = mm(h, a_ref[...])                           # (TB, O*F*k)
        o_ref[...] += mm(t * g_tiled, sel_ref[...])     # (TB, O_pad) accumulator

    return kernel


def ngamoe_forward(x, p):
    """x: [batch, input_dim] float32; p: raw per-feature parameter dict."""
    B, D = x.shape
    O, W, K = p["arch"].shape
    nh = p["nam_wh"].shape[0]
    f32 = jnp.float32

    # ---- packing geometry ---------------------------------------------------
    F = 128 // W if (W <= 128 and 128 % W == 0) else 1   # features per grid step
    # TODO(synk): widths that do not divide 128 fall back to F=1 (lane-sparse tiles).
    n_fb = -(-D // F)
    Dp = n_fb * F
    FW = F * W
    OFK = O * F * K
    OPAD = max(_round_up(O, 128), 128)
    Bp = _round_up(B, 8)
    TB = Bp if Bp <= 256 else 256
    Bp = _round_up(Bp, TB)
    n_bt = Bp // TB

    # ---- pad the feature axis to Dp (padded features contribute exactly zero) ----
    def padfeat(a, axis=0):
        pad = [(0, 0)] * a.ndim
        pad[axis] = (0, Dp - D)
        return jnp.pad(a.astype(f32), pad)

    nam_w1, nam_b1 = padfeat(p["nam_w1"]), padfeat(p["nam_b1"])
    exp_w1, exp_b1 = padfeat(p["exp_w1"]), padfeat(p["exp_b1"])
    nam_wf, nam_bf = padfeat(p["nam_wf"]), padfeat(p["nam_bf"])
    exp_wf, exp_bf = padfeat(p["exp_wf"]), padfeat(p["exp_bf"])
    nam_wh, nam_bh = padfeat(p["nam_wh"], 1), padfeat(p["nam_bh"], 1)
    exp_wh, exp_bh = padfeat(p["exp_wh"], 1), padfeat(p["exp_bh"], 1)

    # ---- stacked row operand: first-layer weights + every bias (one DMA / step) ----
    def rowify(a):                            # [Dp, ..., W] -> [n_fb, F*W]
        return a.reshape(n_fb, FW)

    row_list = [rowify(nam_w1), rowify(nam_b1), rowify(exp_w1), rowify(exp_b1)]
    row_list += [rowify(nam_bh[l]) for l in range(nh)]
    row_list += [rowify(exp_bh[l]) for l in range(nh)]
    row_list.append(rowify(nam_bf))
    rows = jnp.stack(row_list, axis=1)        # [n_fb, 5 + 2*nh, FW]
    n_rows = rows.shape[1]

    # ---- stacked block-diagonal [FW, FW] matrices (one DMA / step) -----------
    def block_diag_fb(w):                     # [Dp, W, C] -> [n_fb, F*W, F*C]
        _, Win, C = w.shape
        wb = w.reshape(n_fb, F, Win, C)
        out = jnp.zeros((n_fb, F * Win, F * C), f32)
        for f in range(F):
            out = out.at[:, f * Win:(f + 1) * Win, f * C:(f + 1) * C].set(wb[:, f])
        return out

    mat_list = [block_diag_fb(nam_wh[l]) for l in range(nh)]
    mat_list.append(block_diag_fb(nam_wf))
    mat_list += [block_diag_fb(exp_wh[l]) for l in range(nh)]
    mats = jnp.stack(mat_list, axis=1)        # [n_fb, 2*nh + 1, FW, FW]
    n_mats = mats.shape[1]

    # ---- expert final layer, columns replicated O times -----------------------
    wfe_bd = block_diag_fb(exp_wf)                                   # [n_fb, FW, F*K]
    wfer = jnp.tile(wfe_bd, (1, 1, O))                               # [n_fb, FW, O*F*K]
    bfer = jnp.tile(exp_bf.reshape(n_fb, F * K), (1, O)).reshape(n_fb, 1, OFK)

    # ---- shared (resident) operands: tiled archetypes + segment-sum matrix ----
    a_base = jnp.transpose(p["arch"].astype(f32), (1, 0, 2))         # [W, O, K]
    a_tiled = jnp.zeros((F, W, O, F, K), f32)
    for f in range(F):
        a_tiled = a_tiled.at[f, :, :, f, :].set(a_base)
    a_tiled = a_tiled.reshape(FW, OFK)                               # [FW, O*F*K]

    o_of_row = jnp.repeat(jnp.arange(O), F * K)
    sel = (o_of_row[:, None] == jnp.arange(OPAD)[None, :]).astype(f32)  # [OFK, OPAD]

    # ---- x, repeated W times along lanes so the first layer is pure VPU -------
    x_pad = jnp.zeros((Bp, Dp), f32).at[:B, :D].set(x.astype(f32))
    xrep = jnp.repeat(x_pad, W, axis=1).reshape(Bp, n_fb, FW).transpose(1, 0, 2)

    # ---- pallas_call -----------------------------------------------------------
    out = pl.pallas_call(
        _make_ngamoe_kernel(nh),
        out_shape=jax.ShapeDtypeStruct((Bp, OPAD), f32),
        grid_spec=pltpu.PrefetchScalarGridSpec(
            num_scalar_prefetch=0,
            grid=(n_bt, n_fb),                       # (batch tiles, feature blocks)
            in_specs=[
                pl.BlockSpec((None, TB, FW), lambda bi, fb: (fb, bi, 0)),       # xrep
                pl.BlockSpec((None, n_rows, FW), lambda bi, fb: (fb, 0, 0)),    # rows
                pl.BlockSpec((None, n_mats, FW, FW),
                             lambda bi, fb: (fb, 0, 0, 0)),                     # mats
                pl.BlockSpec((None, FW, OFK), lambda bi, fb: (fb, 0, 0)),       # wfer
                pl.BlockSpec((None, 1, OFK), lambda bi, fb: (fb, 0, 0)),        # bfer
                pl.BlockSpec((FW, OFK), lambda bi, fb: (0, 0)),                 # A (resident)
                pl.BlockSpec((OFK, OPAD), lambda bi, fb: (0, 0)),               # sel (resident)
            ],
            out_specs=pl.BlockSpec((TB, OPAD), lambda bi, fb: (bi, 0)),
        ),
        compiler_params=pltpu.CompilerParams(
            dimension_semantics=("parallel", "arbitrary")),   # reduce over features
    )(xrep, rows, mats, wfer, bfer, a_tiled, sel)

    return out[:B, :O]   # link_fn = identity_link


def init_ngamoe_params(key, input_dim, output_dim, k, width, layers):
    """Deterministic params, PyTorch-like uniform fan-in init, [in, out] layout."""
    nh = max(layers - 3, 0)
    keys = jax.random.split(key, 13)

    def unif(kk, shape, fan_in):
        b = 1.0 / float(fan_in) ** 0.5
        return jax.random.uniform(kk, shape, jnp.float32, -b, b)

    ki = iter(keys)
    return {
        "nam_w1": unif(next(ki), (input_dim, 1, width), 1),
        "nam_b1": unif(next(ki), (input_dim, width), 1),
        "nam_wh": unif(next(ki), (nh, input_dim, width, width), width),
        "nam_bh": unif(next(ki), (nh, input_dim, width), width),
        "nam_wf": unif(next(ki), (input_dim, width, width), width),
        "nam_bf": unif(next(ki), (input_dim, width), width),
        "exp_w1": unif(next(ki), (input_dim, 1, width), 1),
        "exp_b1": unif(next(ki), (input_dim, width), 1),
        "exp_wh": unif(next(ki), (nh, input_dim, width, width), width),
        "exp_bh": unif(next(ki), (nh, input_dim, width), width),
        "exp_wf": unif(next(ki), (input_dim, width, k), width),
        "exp_bf": unif(next(ki), (input_dim, k), width),
        # SoftSelect archetypes: U(-0.01, 0.01) as in the module.
        "arch": jax.random.uniform(next(ki), (output_dim, width, k),
                                   jnp.float32, -0.01, 0.01),
    }


def ngamoe_reference(x, p):
    """Plain-JAX reference matching the PyTorch forward (per-feature loop)."""
    with jax.default_matmul_precision("highest"):
        B, D = x.shape
        O = p["arch"].shape[0]
        nh = p["nam_wh"].shape[0]
        ret = jnp.zeros((B, O), jnp.float32)
        for i in range(D):
            xi = x[:, i:i + 1]
            h = jax.nn.relu(xi @ p["nam_w1"][i] + p["nam_b1"][i])
            for l in range(nh):
                h = jax.nn.relu(h @ p["nam_wh"][l, i] + p["nam_bh"][l, i])
            h = jax.nn.relu(h @ p["nam_wf"][i] + p["nam_bf"][i])       # [B, W]
            g = jax.nn.relu(xi @ p["exp_w1"][i] + p["exp_b1"][i])
            for l in range(nh):
                g = jax.nn.relu(g @ p["exp_wh"][l, i] + p["exp_bh"][l, i])
            g = jax.nn.relu(g @ p["exp_wf"][i] + p["exp_bf"][i])       # [B, k]
            lin = jnp.einsum("owj,bj->bow", p["arch"], g)              # SoftSelect
            ret = ret + jnp.einsum("bow,bw->bo", lin, h)
        return ret  # identity link


if __name__ == "__main__":
    # Small config consistent with the module: NGAMOE(input_dim=8, output_dim=8,
    # k=4, width=32, layers=4) -> one hidden Linear(W,W)+ReLU per branch.
    batch, input_dim, output_dim, k, width, layers = 8, 8, 8, 4, 32, 4

    key = jax.random.PRNGKey(0)
    kx, kp = jax.random.split(key)
    x = jax.random.normal(kx, (batch, input_dim), jnp.float32)
    params = init_ngamoe_params(kp, input_dim, output_dim, k, width, layers)

    out = jax.jit(ngamoe_forward)(x, params)
    out = jax.block_until_ready(out)

    ref = ngamoe_reference(x, params)
    assert out.shape == (batch, output_dim)
    max_err = float(jnp.max(jnp.abs(out - ref)))
    assert max_err < 1e-2, f"max abs err {max_err}"

    print("KERNEL_OK")
</pallas_src>

<mosaic_0001>
module attributes {stable_mosaic.version = 11 : i64} {
  func.func @kernel(%arg0: i32, %arg1: i32, %arg2: memref<1x8x128xf32, #tpu.memory_space<vmem>>, %arg3: memref<1x7x128xf32, #tpu.memory_space<vmem>>, %arg4: memref<1x3x128x128xf32, #tpu.memory_space<vmem>>, %arg5: memref<1x128x128xf32, #tpu.memory_space<vmem>>, %arg6: memref<1x1x128xf32, #tpu.memory_space<vmem>>, %arg7: memref<128x128xf32, #tpu.memory_space<vmem>>, %arg8: memref<128x128xf32, #tpu.memory_space<vmem>>, %arg9: memref<8x128xf32, #tpu.memory_space<vmem>>) attributes {dimension_semantics = [#tpu.dimension_semantics<parallel>, #tpu.dimension_semantics<arbitrary>], iteration_bounds = array<i64: 1, 2>, scalar_prefetch = 0 : i64, scratch_operands = 0 : i64, tpu.core_type = #tpu.core_type<tc>, window_params = [{transform_indices = @transform_0, window_bounds = array<i64: 1, 8, 128>}, {transform_indices = @transform_1, window_bounds = array<i64: 1, 7, 128>}, {transform_indices = @transform_2, window_bounds = array<i64: 1, 3, 128, 128>}, {transform_indices = @transform_3, window_bounds = array<i64: 1, 128, 128>}, {transform_indices = @transform_4, window_bounds = array<i64: 1, 1, 128>}, {pipeline_mode = #tpu.pipeline_mode<synchronous>, transform_indices = @transform_5, window_bounds = array<i64: 128, 128>}, {pipeline_mode = #tpu.pipeline_mode<synchronous>, transform_indices = @transform_6, window_bounds = array<i64: 128, 128>}, {transform_indices = @transform_7, window_bounds = array<i64: 8, 128>}]} {
    %c0_i32 = arith.constant 0 : i32
    %0 = arith.cmpi eq, %arg1, %c0_i32 : i32
    %1 = arith.extui %0 : i1 to i32
    %c0_i32_0 = arith.constant 0 : i32
    %2 = arith.cmpi ne, %1, %c0_i32_0 : i32
    scf.if %2 {
      %cst_55 = arith.constant 0.000000e+00 : f32
      %69 = vector.broadcast %cst_55 : f32 to vector<8x128xf32>
      %c0_56 = arith.constant 0 : index
      %c0_57 = arith.constant 0 : index
      %70 = vector.load %arg9[%c0_56, %c0_57] : memref<8x128xf32, #tpu.memory_space<vmem>>, vector<8x128xf32>
      tpu.vector_store %arg9[%c0_56, %c0_57], %69 {strides = array<i32>} : memref<8x128xf32, #tpu.memory_space<vmem>>, vector<8x128xf32>,
    } else {
    }
    %c0 = arith.constant 0 : index
    %c0_1 = arith.constant 0 : index
    %c0_2 = arith.constant 0 : index
    %3 = vector.load %arg2[%c0, %c0_1, %c0_2] : memref<1x8x128xf32, #tpu.memory_space<vmem>>, vector<1x8x128xf32>
    %4 = vector.shape_cast %3 : vector<1x8x128xf32> to vector<8x128xf32>
    %c0_3 = arith.constant 0 : index
    %c0_4 = arith.constant 0 : index
    %c0_5 = arith.constant 0 : index
    %5 = vector.load %arg3[%c0_3, %c0_4, %c0_5] : memref<1x7x128xf32, #tpu.memory_space<vmem>>, vector<1x1x128xf32>
    %6 = vector.shape_cast %5 : vector<1x1x128xf32> to vector<1x128xf32>
    %7 = vector.broadcast %6 : vector<1x128xf32> to vector<8x128xf32>
    %8 = arith.mulf %4, %7 : vector<8x128xf32>
    %c0_6 = arith.constant 0 : index
    %c1 = arith.constant 1 : index
    %c0_7 = arith.constant 0 : index
    %9 = vector.load %arg3[%c0_6, %c1, %c0_7] : memref<1x7x128xf32, #tpu.memory_space<vmem>>, vector<1x1x128xf32>
    %10 = vector.shape_cast %9 : vector<1x1x128xf32> to vector<1x128xf32>
    %11 = vector.broadcast %10 : vector<1x128xf32> to vector<8x128xf32>
    %12 = arith.addf %8, %11 : vector<8x128xf32>
    %cst = arith.constant 0.000000e+00 : f32
    %13 = vector.broadcast %cst : f32 to vector<8x128xf32>
    %14 = arith.maximumf %12, %13 : vector<8x128xf32>
    %c0_8 = arith.constant 0 : index
    %c0_9 = arith.constant 0 : index
    %c0_10 = arith.constant 0 : index
    %c0_11 = arith.constant 0 : index
    %15 = vector.load %arg4[%c0_8, %c0_9, %c0_10, %c0_11] : memref<1x3x128x128xf32, #tpu.memory_space<vmem>>, vector<1x1x128x128xf32>
    %16 = vector.shape_cast %15 : vector<1x1x128x128xf32> to vector<128x128xf32>
    %cst_12 = arith.constant dense<0.000000e+00> : vector<8x128xf32>
    %17 = tpu.matmul %14, %16, %cst_12 {dimension_numbers = #tpu.dot_dimension_numbers<[1], [0], [0], [1], [0, 0, 1, 1], [], []>} : vector<8x128xf32>, vector<128x128xf32>, vector<8x128xf32> -> vector<8x128xf32>
    %c0_13 = arith.constant 0 : index
    %c4 = arith.constant 4 : index
    %c0_14 = arith.constant 0 : index
    %18 = vector.load %arg3[%c0_13, %c4, %c0_14] : memref<1x7x128xf32, #tpu.memory_space<vmem>>, vector<1x1x128xf32>
    %19 = vector.shape_cast %18 : vector<1x1x128xf32> to vector<1x128xf32>
    %20 = vector.broadcast %19 : vector<1x128xf32> to vector<8x128xf32>
    %21 = arith.addf %17, %20 : vector<8x128xf32>
    %cst_15 = arith.constant 0.000000e+00 : f32
    %22 = vector.broadcast %cst_15 : f32 to vector<8x128xf32>
    %23 = arith.maximumf %21, %22 : vector<8x128xf32>
    %c0_16 = arith.constant 0 : index
    %c1_17 = arith.constant 1 : index
    %c0_18 = arith.constant 0 : index
    %c0_19 = arith.constant 0 : index
    %24 = vector.load %arg4[%c0_16, %c1_17, %c0_18, %c0_19] : memref<1x3x128x128xf32, #tpu.memory_space<vmem>>, vector<1x1x128x128xf32>
    %25 = vector.shape_cast %24 : vector<1x1x128x128xf32> to vector<128x128xf32>
    %cst_20 = arith.constant dense<0.000000e+00> : vector<8x128xf32>
    %26 = tpu.matmul %23, %25, %cst_20 {dimension_numbers = #tpu.dot_dimension_numbers<[1], [0], [0], [1], [0, 0, 1, 1], [], []>} : vector<8x128xf32>, vector<128x128xf32>, vector<8x128xf32> -> vector<8x128xf32>
    %c0_21 = arith.constant 0 : index
    %c6 = arith.constant 6 : index
    %c0_22 = arith.constant 0 : index
    %27 = vector.load %arg3[%c0_21, %c6, %c0_22] : memref<1x7x128xf32, #tpu.memory_space<vmem>>, vector<1x1x128xf32>
    %28 = vector.shape_cast %27 : vector<1x1x128xf32> to vector<1x128xf32>
    %29 = vector.broadcast %28 : vector<1x128xf32> to vector<8x128xf32>
    %30 = arith.addf %26, %29 : vector<8x128xf32>
    %cst_23 = arith.constant 0.000000e+00 : f32
    %31 = vector.broadcast %cst_23 : f32 to vector<8x128xf32>
    %32 = arith.maximumf %30, %31 : vector<8x128xf32>
    %c0_24 = arith.constant 0 : index
    %c2 = arith.constant 2 : index
    %c0_25 = arith.constant 0 : index
    %33 = vector.load %arg3[%c0_24, %c2, %c0_25] : memref<1x7x128xf32, #tpu.memory_space<vmem>>, vector<1x1x128xf32>
    %34 = vector.shape_cast %33 : vector<1x1x128xf32> to vector<1x128xf32>
    %35 = vector.broadcast %34 : vector<1x128xf32> to vector<8x128xf32>
    %36 = arith.mulf %4, %35 : vector<8x128xf32>
    %c0_26 = arith.constant 0 : index
    %c3 = arith.constant 3 : index
    %c0_27 = arith.constant 0 : index
    %37 = vector.load %arg3[%c0_26, %c3, %c0_27] : memref<1x7x128xf32, #tpu.memory_space<vmem>>, vector<1x1x128xf32>
    %38 = vector.shape_cast %37 : vector<1x1x128xf32> to vector<1x128xf32>
    %39 = vector.broadcast %38 : vector<1x128xf32> to vector<8x128xf32>
    %40 = arith.addf %36, %39 : vector<8x128xf32>
    %cst_28 = arith.constant 0.000000e+00 : f32
    %41 = vector.broadcast %cst_28 : f32 to vector<8x128xf32>
    %42 = arith.maximumf %40, %41 : vector<8x128xf32>
    %c0_29 = arith.constant 0 : index
    %c2_30 = arith.constant 2 : index
    %c0_31 = arith.constant 0 : index
    %c0_32 = arith.constant 0 : index
    %43 = vector.load %arg4[%c0_29, %c2_30, %c0_31, %c0_32] : memref<1x3x128x128xf32, #tpu.memory_space<vmem>>, vector<1x1x128x128xf32>
    %44 = vector.shape_cast %43 : vector<1x1x128x128xf32> to vector<128x128xf32>
    %cst_33 = arith.constant dense<0.000000e+00> : vector<8x128xf32>
    %45 = tpu.matmul %42, %44, %cst_33 {dimension_numbers = #tpu.dot_dimension_numbers<[1], [0], [0], [1], [0, 0, 1, 1], [], []>} : vector<8x128xf32>, vector<128x128xf32>, vector<8x128xf32> -> vector<8x128xf32>
    %c0_34 = arith.constant 0 : index
    %c5 = arith.constant 5 : index
    %c0_35 = arith.constant 0 : index
    %46 = vector.load %arg3[%c0_34, %c5, %c0_35] : memref<1x7x128xf32, #tpu.memory_space<vmem>>, vector<1x1x128xf32>
    %47 = vector.shape_cast %46 : vector<1x1x128xf32> to vector<1x128xf32>
    %48 = vector.broadcast %47 : vector<1x128xf32> to vector<8x128xf32>
    %49 = arith.addf %45, %48 : vector<8x128xf32>
    %cst_36 = arith.constant 0.000000e+00 : f32
    %50 = vector.broadcast %cst_36 : f32 to vector<8x128xf32>
    %51 = arith.maximumf %49, %50 : vector<8x128xf32>
    %c0_37 = arith.constant 0 : index
    %c0_38 = arith.constant 0 : index
    %c0_39 = arith.constant 0 : index
    %52 = vector.load %arg5[%c0_37, %c0_38, %c0_39] : memref<1x128x128xf32, #tpu.memory_space<vmem>>, vector<1x128x128xf32>
    %53 = vector.shape_cast %52 : vector<1x128x128xf32> to vector<128x128xf32>
    %cst_40 = arith.constant dense<0.000000e+00> : vector<8x128xf32>
    %54 = tpu.matmul %51, %53, %cst_40 {dimension_numbers = #tpu.dot_dimension_numbers<[1], [0], [0], [1], [0, 0, 1, 1], [], []>} : vector<8x128xf32>, vector<128x128xf32>, vector<8x128xf32> -> vector<8x128xf32>
    %c0_41 = arith.constant 0 : index
    %c0_42 = arith.constant 0 : index
    %c0_43 = arith.constant 0 : index
    %55 = vector.load %arg6[%c0_41, %c0_42, %c0_43] : memref<1x1x128xf32, #tpu.memory_space<vmem>>, vector<1x1x128xf32>
    %56 = vector.shape_cast %55 : vector<1x1x128xf32> to vector<1x128xf32>
    %57 = vector.broadcast %56 : vector<1x128xf32> to vector<8x128xf32>
    %58 = arith.addf %54, %57 : vector<8x128xf32>
    %cst_44 = arith.constant 0.000000e+00 : f32
    %59 = vector.broadcast %cst_44 : f32 to vector<8x128xf32>
    %60 = arith.maximumf %58, %59 : vector<8x128xf32>
    %c0_45 = arith.constant 0 : index
    %c0_46 = arith.constant 0 : index
    %61 = vector.load %arg7[%c0_45, %c0_46] : memref<128x128xf32, #tpu.memory_space<vmem>>, vector<128x128xf32>
    %cst_47 = arith.constant dense<0.000000e+00> : vector<8x128xf32>
    %62 = tpu.matmul %32, %61, %cst_47 {dimension_numbers = #tpu.dot_dimension_numbers<[1], [0], [0], [1], [0, 0, 1, 1], [], []>} : vector<8x128xf32>, vector<128x128xf32>, vector<8x128xf32> -> vector<8x128xf32>
    %c0_48 = arith.constant 0 : index
    %c0_49 = arith.constant 0 : index
    %63 = vector.load %arg9[%c0_48, %c0_49] : memref<8x128xf32, #tpu.memory_space<vmem>>, vector<8x128xf32>
    %64 = arith.mulf %62, %60 : vector<8x128xf32>
    %c0_50 = arith.constant 0 : index
    %c0_51 = arith.constant 0 : index
    %65 = vector.load %arg8[%c0_50, %c0_51] : memref<128x128xf32, #tpu.memory_space<vmem>>, vector<128x128xf32>
    %cst_52 = arith.constant dense<0.000000e+00> : vector<8x128xf32>
    %66 = tpu.matmul %64, %65, %cst_52 {dimension_numbers = #tpu.dot_dimension_numbers<[1], [0], [0], [1], [0, 0, 1, 1], [], []>} : vector<8x128xf32>, vector<128x128xf32>, vector<8x128xf32> -> vector<8x128xf32>
    %67 = arith.addf %63, %66 : vector<8x128xf32>
    %c0_53 = arith.constant 0 : index
    %c0_54 = arith.constant 0 : index
    %68 = vector.load %arg9[%c0_53, %c0_54] : memref<8x128xf32, #tpu.memory_space<vmem>>, vector<8x128xf32>
    tpu.vector_store %arg9[%c0_53, %c0_54], %67 {strides = array<i32>} : memref<8x128xf32, #tpu.memory_space<vmem>>, vector<8x128xf32>,
    return
  }
  func.func @transform_0(%arg0: i32, %arg1: i32) -> (i32, i32, i32) {
    %c0_i32 = arith.constant 0 : i32
    %c0_i32_0 = arith.constant 0 : i32
    return %arg1, %arg0, %c0_i32 : i32, i32, i32
  }
  func.func @transform_1(%arg0: i32, %arg1: i32) -> (i32, i32, i32) {
    %c0_i32 = arith.constant 0 : i32
    %c0_i32_0 = arith.constant 0 : i32
    %c0_i32_1 = arith.constant 0 : i32
    return %arg1, %c0_i32, %c0_i32_0 : i32, i32, i32
  }
  func.func @transform_2(%arg0: i32, %arg1: i32) -> (i32, i32, i32, i32) {
    %c0_i32 = arith.constant 0 : i32
    %c0_i32_0 = arith.constant 0 : i32
    %c0_i32_1 = arith.constant 0 : i32
    %c0_i32_2 = arith.constant 0 : i32
    return %arg1, %c0_i32, %c0_i32_0, %c0_i32_1 : i32, i32, i32, i32
  }
  func.func @transform_3(%arg0: i32, %arg1: i32) -> (i32, i32, i32) {
    %c0_i32 = arith.constant 0 : i32
    %c0_i32_0 = arith.constant 0 : i32
    %c0_i32_1 = arith.constant 0 : i32
    return %arg1, %c0_i32, %c0_i32_0 : i32, i32, i32
  }
  func.func @transform_4(%arg0: i32, %arg1: i32) -> (i32, i32, i32) {
    %c0_i32 = arith.constant 0 : i32
    %c0_i32_0 = arith.constant 0 : i32
    %c0_i32_1 = arith.constant 0 : i32
    return %arg1, %c0_i32, %c0_i32_0 : i32, i32, i32
  }
  func.func @transform_5(%arg0: i32, %arg1: i32) -> (i32, i32) {
    %c0_i32 = arith.constant 0 : i32
    %c0_i32_0 = arith.constant 0 : i32
    %c0_i32_1 = arith.constant 0 : i32
    return %c0_i32, %c0_i32_0 : i32, i32
  }
  func.func @transform_6(%arg0: i32, %arg1: i32) -> (i32, i32) {
    %c0_i32 = arith.constant 0 : i32
    %c0_i32_0 = arith.constant 0 : i32
    %c0_i32_1 = arith.constant 0 : i32
    return %c0_i32, %c0_i32_0 : i32, i32
  }
  func.func @transform_7(%arg0: i32, %arg1: i32) -> (i32, i32) {
    %c0_i32 = arith.constant 0 : i32
    %c0_i32_0 = arith.constant 0 : i32
    return %arg0, %c0_i32 : i32, i32
  }
}

</mosaic_0001>

<llo_original>
// kernel: squeeze.20
$region0: #{squeeze.20}
  %s0 = inlined_call_operand.vmem [shape: f32[1,8,32], index: 0, kind: input, shape index: {}]
  %s1 = inlined_call_operand.vmem [shape: f32[2,1,128], index: 1, kind: output, shape index: {}]
  $region1: #{squeeze.20} parent=0
    #allocation0 [shape = 'u8[8192]{0}', space=vmem, size = 0x2000, scoped, tag = 'scoped mem for output reshape']
    %s2 = smov 3
    %v3 = vld [vmem:[%s0] ss:$4 sm:%s2]
    %vm4 = vcmask 261120
    %5 = vst.msk [vmem:[#allocation0] ss:$8 sm:$0x3] %vm4, %v3
    %s6 = scalar_lea.vmem %s0, 3
    %s7 = smov 3
    %v8 = vld [vmem:[%s6] ss:$4 sm:%s7]
    %9 = vrot.lane.b32.xlu0 %v8, 96
    %v10 = vpop.permute.xlu0 %9
    %vm11 = vcmask 1048320
    %12 = vst.msk [vmem:[#allocation0] ss:$8 sm:$0x3] %vm11, %v10
    %s13 = scalar_lea.vmem %s0, 2
    %s14 = smov 3
    %v15 = vld [vmem:[%s13] ss:$4 sm:%s14]
    %16 = vrot.lane.b32.xlu0 %v15, 64
    %v17 = vpop.permute.xlu0 %16
    %vm18 = vcmask 785920
    %19 = vst.msk [vmem:[#allocation0] ss:$8 sm:$0x3] %vm18, %v17
    %s20 = scalar_lea.vmem %s0, 1
    %s21 = smov 3
    %v22 = vld [vmem:[%s20] ss:$4 sm:%s21]
    %23 = vrot.lane.b32.xlu0 %v22, 32
    %v24 = vpop.permute.xlu0 %23
    %vm25 = vcmask 523520
    %26 = vst.msk [vmem:[#allocation0] ss:$8 sm:$0x3] %vm25, %v24
    %s28 = ssub.s32 2, 1
    %v29 = vld [vmem:[#allocation0] sm:%s28]
    %s31 = ssub.s32 2, 1
    %32 = vst [vmem:[%s1] sm:%s31] %v29
    %s33 = scalar_lea.vmem [#allocation0], 8
    %v34 = vld [vmem:[%s33] sm:%s28]
    %s36 = ssub.s32 2, 1
    %s37 = scalar_lea.vmem %s1, 1
    %38 = vst [vmem:[%s37] sm:%s36] %v34

// kernel: eq.8
$region0: #{eq.8}
  %s0 = inlined_call_operand.vmem [shape: s32[8,16], index: 0, kind: input, shape index: {}]
  %s1 = inlined_call_operand.vmem [shape: s32[128], index: 1, kind: output, shape index: {}]
  $region1: #{eq.8} parent=0
    #allocation0 [shape = 'u8[4096]{0}', space=vmem, size = 0x1000, scoped, tag = 'scoped mem for output reshape']
    %v2 = vld [vmem:[%s0] sm:$0x1]
    %vm3 = vcmask 130048
    %4 = vst.msk [vmem:[#allocation0] sm:$0x1] %vm3, %v2
    %s5 = scalar_lea.vmem %s0, 7
    %v6 = vld [vmem:[%s5] sm:$0x1]
    %7 = vrot.lane.b32.xlu0 %v6, 112
    %v8 = vpop.permute.xlu0 %7
    %vm9 = vcmask 1048448
    %10 = vst.msk [vmem:[#allocation0] sm:$0x1] %vm9, %v8
    %s11 = scalar_lea.vmem %s0, 6
    %v12 = vld [vmem:[%s11] sm:$0x1]
    %13 = vrot.lane.b32.xlu0 %v12, 96
    %v14 = vpop.permute.xlu0 %13
    %vm15 = vcmask 917248
    %16 = vst.msk [vmem:[#allocation0] sm:$0x1] %vm15, %v14
    %s17 = scalar_lea.vmem %s0, 5
    %v18 = vld [vmem:[%s17] sm:$0x1]
    %19 = vrot.lane.b32.xlu0 %v18, 80
    %v20 = vpop.permute.xlu0 %19
    %vm21 = vcmask 786048
    %22 = vst.msk [vmem:[#allocation0] sm:$0x1] %vm21, %v20
    %s23 = scalar_lea.vmem %s0, 4
    %v24 = vld [vmem:[%s23] sm:$0x1]
    %25 = vrot.lane.b32.xlu0 %v24, 64
    %v26 = vpop.permute.xlu0 %25
    %vm27 = vcmask 654848
    %28 = vst.msk [vmem:[#allocation0] sm:$0x1] %vm27, %v26
    %s29 = scalar_lea.vmem %s0, 3
    %v30 = vld [vmem:[%s29] sm:$0x1]
    %31 = vrot.lane.b32.xlu0 %v30, 48
    %v32 = vpop.permute.xlu0 %31
    %vm33 = vcmask 523648
    %34 = vst.msk [vmem:[#allocation0] sm:$0x1] %vm33, %v32
    %s35 = scalar_lea.vmem %s0, 2
    %v36 = vld [vmem:[%s35] sm:$0x1]
    %37 = vrot.lane.b32.xlu0 %v36, 32
    %v38 = vpop.permute.xlu0 %37
    %vm39 = vcmask 392448
    %40 = vst.msk [vmem:[#allocation0] sm:$0x1] %vm39, %v38
    %s41 = scalar_lea.vmem %s0, 1
    %v42 = vld [vmem:[%s41] sm:$0x1]
    %43 = vrot.lane.b32.xlu0 %v42, 16
    %v44 = vpop.permute.xlu0 %43
    %vm45 = vcmask 261248
    %46 = vst.msk [vmem:[#allocation0] sm:$0x1] %vm45, %v44
    %s48 = ssub.s32 2, 1
    %v49 = vld [vmem:[#allocation0] sm:%s48]
    %s51 = ssub.s32 2, 1
    %52 = vst [vmem:[%s1] sm:%s51] %v49

// kernel: ngamoe_forward.1
$region0: #{ngamoe_forward.1}
  #allocation0 [shape = 'u32[]', space=smem, size = 0x4, offset = 0x4, fixed_abs, tag = 'smem constant byte address 0x4 - core index']
  #allocation1 [shape = 'u32[72,128]{1,0:T(1,128)}', space=vmem, size = 0x9000, scoped, tag = 'internal scratch']
  %s0 = inlined_call_operand.vmem [shape: f32[2,8,128], index: 0, kind: input, shape index: {}]
  %s1 = inlined_call_operand.vmem [shape: f32[2,7,128], index: 1, kind: input, shape index: {}]
  %s2 = inlined_call_operand.vmem [shape: f32[2,3,128,128], index: 2, kind: input, shape index: {}]
  %s3 = inlined_call_operand.vmem [shape: f32[2,128,128], index: 3, kind: input, shape index: {}]
  %s4 = inlined_call_operand.vmem [shape: f32[2,1,128], index: 4, kind: input, shape index: {}]
  %s5 = inlined_call_operand.vmem [shape: f32[128,128], index: 5, kind: input, shape index: {}]
  %s6 = inlined_call_operand.vmem [shape: f32[128,128], index: 6, kind: input, shape index: {}]
  %s7 = inlined_call_operand.hbm [shape: f32[8,128], index: 7, kind: output, shape index: {}]
  %s8 = sld [smem:[#allocation0]]
  $region65: #{ngamoe_forward.1} parent=0
    _
  %s10 = ssub.s32 1, %s8
  %s11 = scalar_select 0, %s10, %s8
  $region1: #{ngamoe_forward.1} parent=0
    #allocation2 [shape = 'u8[4096]{0}', space=vmem, size = 0x1000, scoped, tag = 'output window, operand 0, single buffered']
    #allocation3 [shape = 's32[2]{0}', space=sflag, size = 0x8, scoped, tag = 'scoped memory for ngamoe_forward.1']
    %12 = vsyncpa [#allocation3], 0
    loop: start=0, step=1, limit=4
    $region2: #{ngamoe_forward.1} parent=1 // loop_pre_header
      _
    $region3: #{ngamoe_forward.1} parent=1 // loop_header
      %s14 = sphi 0, %s18
      %p15 = scmp.ge.s32.totalorder %s14, 4
      %s21 = sphi 0, %s33
      %s22 = sphi 0, %s29
      %s23 = sphi 0, %s21
      %s24 = sphi 0, %s22
      %s25 = sphi 0, %s23
      %s26 = sphi 0, %s24
      %s38 = sphi 0, %s40
      %s41 = sphi 0, %s38
      %s42 = sphi 0, %s41
      %s58 = sphi 0, %s42
      %s64 = sphi 0, %s66
      %s67 = sphi 0, %s64
      %s68 = sphi 0, %s67
      %s84 = sphi 0, %s68
      %s90 = sphi 0, %s92
      %s93 = sphi 0, %s90
      %s94 = sphi 0, %s93
      %s110 = sphi 0, %s94
      %s116 = sphi 0, %s118
      %s119 = sphi 0, %s116
      %s120 = sphi 0, %s119
      %s136 = sphi 0, %s120
      %s142 = sphi 0, %s144
      %s145 = sphi 0, %s142
      %s146 = sphi 0, %s145
      %s162 = sphi 0, %s146
      %s166 = sphi 0, %s166
      %s168 = sphi 0, %s166
      %s169 = sphi 0, %s168
      %s183 = sphi 0, %s169
      %s187 = sphi 0, %s187
      %s189 = sphi 0, %s187
      %s190 = sphi 0, %s189
      %s204 = sphi 0, %s190
      %s210 = sphi 0, %s212
      %s213 = sphi 0, %s210
      %s214 = sphi 0, %s213
      %s230 = sphi 0, %s214
    $region4: #{ngamoe_forward.1} parent=1 // loop_header_branch
      %17 = sbr.rel (%p15) target = $region8
    $region5: #{ngamoe_forward.1} parent=1 // loop_body
      %s19 = ssub.s32 %s14, 1
      %s20 = ssub.s32 %s14, 2
      %s27 = sadd.s32 1, %s22
      %p28 = scmp.ge.s32.totalorder %s27, 2
      %s29 = scalar_select %p28, 0, %s27
      %s30 = sadd.s32 1, %s21
      %s31 = scalar_select %p28, %s30, %s21
      %p32 = scmp.ge.s32.totalorder %s31, 1
      %s33 = scalar_select %p32, 0, %s31
      %s34 = ssub.s32 %s22, %s29
      %s35 = ssub.s32 %s21, %s33
      %s36 = sor.u32 %s34, %s35
      %p37 = scmp.eq.s32.totalorder %s36, 0
      %s39 = sadd.s32 %s38, 1
      %s40 = scalar_select %p37, %s38, %s39
      %p43 = pneg %p37
      %p44 = scmp.eq.s32.totalorder %s14, 1
      %p45 = por %p43, %p44
      %p46 = scmp.ne.s32.totalorder %s38, %s41
      %p47 = scmp.eq.s32.totalorder %s14, 0
      %p48 = por %p46, %p47
      %p49 = scmp.ne.s32.totalorder %s38, %s41
      %p50 = scmp.eq.s32.totalorder %s19, 1
      %p51 = por %p49, %p50
      %p52 = scmp.ne.s32.totalorder %s41, %s42
      %p53 = scmp.eq.s32.totalorder %s19, 0
      %p54 = por %p52, %p53
      %p55 = scmp.ne.s32.totalorder %s41, %s42
      %p56 = scmp.eq.s32.totalorder %s20, 1
      %p57 = por %p55, %p56
      %p59 = scmp.ne.s32.totalorder %s42, %s58
      %p60 = scmp.eq.s32.totalorder %s20, 0
      %p61 = por %p59, %p60
      %s62 = ssub.s32 %s22, %s29
      %p63 = scmp.eq.s32.totalorder %s62, 0
      %s65 = sadd.s32 %s64, 1
      %s66 = scalar_select %p63, %s64, %s65
      %p69 = pneg %p63
      %p70 = scmp.eq.s32.totalorder %s14, 1
      %p71 = por %p69, %p70
      %p72 = scmp.ne.s32.totalorder %s64, %s67
      %p73 = scmp.eq.s32.totalorder %s14, 0
      %p74 = por %p72, %p73
      %p75 = scmp.ne.s32.totalorder %s64, %s67
      %p76 = scmp.eq.s32.totalorder %s19, 1
      %p77 = por %p75, %p76
      %p78 = scmp.ne.s32.totalorder %s67, %s68
      %p79 = scmp.eq.s32.totalorder %s19, 0
      %p80 = por %p78, %p79
      %p81 = scmp.ne.s32.totalorder %s67, %s68
      %p82 = scmp.eq.s32.totalorder %s20, 1
      %p83 = por %p81, %p82
      %p85 = scmp.ne.s32.totalorder %s68, %s84
      %p86 = scmp.eq.s32.totalorder %s20, 0
      %p87 = por %p85, %p86
      %s88 = ssub.s32 %s22, %s29
      %p89 = scmp.eq.s32.totalorder %s88, 0
      %s91 = sadd.s32 %s90, 1
      %s92 = scalar_select %p89, %s90, %s91
      %p95 = pneg %p89
      %p96 = scmp.eq.s32.totalorder %s14, 1
      %p97 = por %p95, %p96
      %p98 = scmp.ne.s32.totalorder %s90, %s93
      %p99 = scmp.eq.s32.totalorder %s14, 0
      %p100 = por %p98, %p99
      %p101 = scmp.ne.s32.totalorder %s90, %s93
      %p102 = scmp.eq.s32.totalorder %s19, 1
      %p103 = por %p101, %p102
      %p104 = scmp.ne.s32.totalorder %s93, %s94
      %p105 = scmp.eq.s32.totalorder %s19, 0
      %p106 = por %p104, %p105
      %p107 = scmp.ne.s32.totalorder %s93, %s94
      %p108 = scmp.eq.s32.totalorder %s20, 1
      %p109 = por %p107, %p108
      %p111 = scmp.ne.s32.totalorder %s94, %s110
      %p112 = scmp.eq.s32.totalorder %s20, 0
      %p113 = por %p111, %p112
      %s114 = ssub.s32 %s22, %s29
      %p115 = scmp.eq.s32.totalorder %s114, 0
      %s117 = sadd.s32 %s116, 1
      %s118 = scalar_select %p115, %s116, %s117
      %p121 = pneg %p115
      %p122 = scmp.eq.s32.totalorder %s14, 1
      %p123 = por %p121, %p122
      %p124 = scmp.ne.s32.totalorder %s116, %s119
      %p125 = scmp.eq.s32.totalorder %s14, 0
      %p126 = por %p124, %p125
      %p127 = scmp.ne.s32.totalorder %s116, %s119
      %p128 = scmp.eq.s32.totalorder %s19, 1
      %p129 = por %p127, %p128
      %p130 = scmp.ne.s32.totalorder %s119, %s120
      %p131 = scmp.eq.s32.totalorder %s19, 0
      %p132 = por %p130, %p131
      %p133 = scmp.ne.s32.totalorder %s119, %s120
      %p134 = scmp.eq.s32.totalorder %s20, 1
      %p135 = por %p133, %p134
      %p137 = scmp.ne.s32.totalorder %s120, %s136
      %p138 = scmp.eq.s32.totalorder %s20, 0
      %p139 = por %p137, %p138
      %s140 = ssub.s32 %s22, %s29
      %p141 = scmp.eq.s32.totalorder %s140, 0
      %s143 = sadd.s32 %s142, 1
      %s144 = scalar_select %p141, %s142, %s143
      %p147 = pneg %p141
      %p148 = scmp.eq.s32.totalorder %s14, 1
      %p149 = por %p147, %p148
      %p150 = scmp.ne.s32.totalorder %s142, %s145
      %p151 = scmp.eq.s32.totalorder %s14, 0
      %p152 = por %p150, %p151
      %p153 = scmp.ne.s32.totalorder %s142, %s145
      %p154 = scmp.eq.s32.totalorder %s19, 1
      %p155 = por %p153, %p154
      %p156 = scmp.ne.s32.totalorder %s145, %s146
      %p157 = scmp.eq.s32.totalorder %s19, 0
      %p158 = por %p156, %p157
      %p159 = scmp.ne.s32.totalorder %s145, %s146
      %p160 = scmp.eq.s32.totalorder %s20, 1
      %p161 = por %p159, %p160
      %p163 = scmp.ne.s32.totalorder %s146, %s162
      %p164 = scmp.eq.s32.totalorder %s20, 0
      %p165 = por %p163, %p164
      %s167 = sadd.s32 %s166, 1
      %p170 = scmp.eq.s32.totalorder %s14, 1
      %p171 = scmp.ne.s32.totalorder %s166, %s168
      %p172 = scmp.eq.s32.totalorder %s14, 0
      %p173 = por %p171, %p172
      %p174 = scmp.ne.s32.totalorder %s166, %s168
      %p175 = scmp.eq.s32.totalorder %s19, 1
      %p176 = por %p174, %p175
      %p177 = scmp.ne.s32.totalorder %s168, %s169
      %p178 = scmp.eq.s32.totalorder %s19, 0
      %p179 = por %p177, %p178
      %p180 = scmp.ne.s32.totalorder %s168, %s169
      %p181 = scmp.eq.s32.totalorder %s20, 1
      %p182 = por %p180, %p181
      %p184 = scmp.ne.s32.totalorder %s169, %s183
      %p185 = scmp.eq.s32.totalorder %s20, 0
      %p186 = por %p184, %p185
      %s188 = sadd.s32 %s187, 1
      %p191 = scmp.eq.s32.totalorder %s14, 1
      %p192 = scmp.ne.s32.totalorder %s187, %s189
      %p193 = scmp.eq.s32.totalorder %s14, 0
      %p194 = por %p192, %p193
      %p195 = scmp.ne.s32.totalorder %s187, %s189
      %p196 = scmp.eq.s32.totalorder %s19, 1
      %p197 = por %p195, %p196
      %p198 = scmp.ne.s32.totalorder %s189, %s190
      %p199 = scmp.eq.s32.totalorder %s19, 0
      %p200 = por %p198, %p199
      %p201 = scmp.ne.s32.totalorder %s189, %s190
      %p202 = scmp.eq.s32.totalorder %s20, 1
      %p203 = por %p201, %p202
      %p205 = scmp.ne.s32.totalorder %s190, %s204
      %p206 = scmp.eq.s32.totalorder %s20, 0
      %p207 = por %p205, %p206
      %s208 = ssub.s32 %s21, %s33
      %p209 = scmp.eq.s32.totalorder %s208, 0
      %s211 = sadd.s32 %s210, 1
      %s212 = scalar_select %p209, %s210, %s211
      %p215 = pneg %p209
      %p216 = scmp.eq.s32.totalorder %s14, 1
      %p217 = por %p215, %p216
      %p218 = scmp.ne.s32.totalorder %s210, %s213
      %p219 = scmp.eq.s32.totalorder %s14, 0
      %p220 = por %p218, %p219
      %p221 = scmp.ne.s32.totalorder %s210, %s213
      %p222 = scmp.eq.s32.totalorder %s19, 1
      %p223 = por %p221, %p222
      %p224 = scmp.ne.s32.totalorder %s213, %s214
      %p225 = scmp.eq.s32.totalorder %s19, 0
      %p226 = por %p224, %p225
      %p227 = scmp.ne.s32.totalorder %s213, %s214
      %p228 = scmp.eq.s32.totalorder %s20, 1
      %p229 = por %p227, %p228
      %p231 = scmp.ne.s32.totalorder %s214, %s230
      %p232 = scmp.eq.s32.totalorder %s20, 0
      %p233 = por %p231, %p232
      %p234 = scmp.le.s32.totalorder 1, %s14
      %p235 = scmp.lt.s32.totalorder %s14, 3
      %p236 = pnand %p234, %p235
      %p237 = pneg %p236
      // Predicated region
      $region9: #{ngamoe_forward.1} parent=5 // pred_check
        _
      $region10: #{ngamoe_forward.1} parent=5 // pred_check_branch
        %239 = sbr.rel (%p236) target = $region12
      $region11: #{ngamoe_forward.1} parent=5 // pred_region
        %s240 = ssub.s32 %s14, 1
        // Predicated region
        $region13: #{ngamoe_forward.1} parent=11 // pred_check
          %p241 = pneg %p179
        $region14: #{ngamoe_forward.1} parent=11 // pred_check_branch
          %243 = sbr.rel (%p241) target = $region16
        $region15: #{ngamoe_forward.1} parent=11 // pred_region
          _
        $region16: #{ngamoe_forward.1} parent=11 // pred_fallthru
          _
        // Predicated region
        $region17: #{ngamoe_forward.1} parent=11 // pred_check
          %p244 = pneg %p200
        $region18: #{ngamoe_forward.1} parent=11 // pred_check_branch
          %246 = sbr.rel (%p244) target = $region20
        $region19: #{ngamoe_forward.1} parent=11 // pred_region
          _
        $region20: #{ngamoe_forward.1} parent=11 // pred_fallthru
          _
      $region12: #{ngamoe_forward.1} parent=5 // pred_fallthru
        _
      %p247 = scmp.lt.s32.totalorder %s14, 2
      // Predicated region
      $region21: #{ngamoe_forward.1} parent=5 // pred_check
        %p248 = pneg %p247
      $region22: #{ngamoe_forward.1} parent=5 // pred_check_branch
        %250 = sbr.rel (%p248) target = $region24
      $region23: #{ngamoe_forward.1} parent=5 // pred_region
        // Predicated region
        $region25: #{ngamoe_forward.1} parent=23 // pred_check
          %p251 = pneg %p48
        $region26: #{ngamoe_forward.1} parent=23 // pred_check_branch
          %253 = sbr.rel (%p251) target = $region28
        $region27: #{ngamoe_forward.1} parent=23 // pred_region
          %p254 = scmp.lt.s32.totalorder %s22, 1
          %s255 = scalar_select %p254, %s22, 1
          %p256 = scmp.lt.s32.totalorder %s21, 0
          %s257 = scalar_select %p256, %s21, 0
          %s258 = sadd.s32 %s257, %s255
          %s259 = smul.addr %s258, 8
          %s260 = scalar_lea.vmem %s0, %s259
        $region28: #{ngamoe_forward.1} parent=23 // pred_fallthru
          _
        // Predicated region
        $region29: #{ngamoe_forward.1} parent=23 // pred_check
          %p261 = pneg %p74
        $region30: #{ngamoe_forward.1} parent=23 // pred_check_branch
          %263 = sbr.rel (%p261) target = $region32
        $region31: #{ngamoe_forward.1} parent=23 // pred_region
          %p264 = scmp.lt.s32.totalorder %s22, 1
          %s265 = scalar_select %p264, %s22, 1
          %s266 = smul.addr %s265, 8
          %s267 = scalar_lea.vmem %s1, %s266
        $region32: #{ngamoe_forward.1} parent=23 // pred_fallthru
          _
        // Predicated region
        $region33: #{ngamoe_forward.1} parent=23 // pred_check
          %p268 = pneg %p100
        $region34: #{ngamoe_forward.1} parent=23 // pred_check_branch
          %270 = sbr.rel (%p268) target = $region36
        $region35: #{ngamoe_forward.1} parent=23 // pred_region
          %p271 = scmp.lt.s32.totalorder %s22, 1
          %s272 = scalar_select %p271, %s22, 1
          %s273 = smul.addr %s272, 48
          %s274 = smul.addr %s273, 8
          %s275 = scalar_lea.vmem %s2, %s274
        $region36: #{ngamoe_forward.1} parent=23 // pred_fallthru
          _
        // Predicated region
        $region37: #{ngamoe_forward.1} parent=23 // pred_check
          %p276 = pneg %p126
        $region38: #{ngamoe_forward.1} parent=23 // pred_check_branch
          %278 = sbr.rel (%p276) target = $region40
        $region39: #{ngamoe_forward.1} parent=23 // pred_region
          %p279 = scmp.lt.s32.totalorder %s22, 1
          %s280 = scalar_select %p279, %s22, 1
          %s281 = smul.addr %s280, 16
          %s282 = smul.addr %s281, 8
          %s283 = scalar_lea.vmem %s3, %s282
        $region40: #{ngamoe_forward.1} parent=23 // pred_fallthru
          _
        // Predicated region
        $region41: #{ngamoe_forward.1} parent=23 // pred_check
          %p284 = pneg %p152
        $region42: #{ngamoe_forward.1} parent=23 // pred_check_branch
          %286 = sbr.rel (%p284) target = $region44
        $region43: #{ngamoe_forward.1} parent=23 // pred_region
          %p287 = scmp.lt.s32.totalorder %s22, 1
          %s288 = scalar_select %p287, %s22, 1
          %s289 = scalar_lea.vmem %s4, %s288
        $region44: #{ngamoe_forward.1} parent=23 // pred_fallthru
          _
      $region24: #{ngamoe_forward.1} parent=5 // pred_fallthru
        _
      %p290 = scmp.le.s32.totalorder 1, %s14
      %p291 = scmp.lt.s32.totalorder %s14, 3
      %p292 = pnand %p290, %p291
      %p293 = pneg %p292
      // Predicated region
      $region45: #{ngamoe_forward.1} parent=5 // pred_check
        _
      $region46: #{ngamoe_forward.1} parent=5 // pred_check_branch
        %295 = sbr.rel (%p292) target = $region48
      $region47: #{ngamoe_forward.1} parent=5 // pred_region
        %s296 = ssub.s32 %s14, 1
        %p297 = scmp.lt.s32.totalorder %s24, 1
        %s298 = scalar_select %p297, %s24, 1
        %p299 = scmp.lt.s32.totalorder %s23, 0
        %s300 = scalar_select %p299, %s23, 0
        %s301 = sadd.s32 %s300, %s298
        %s302 = smul.addr %s301, 8
        %s303 = scalar_lea.vmem %s0, %s302
        %p304 = pneg %p54
        %p305 = pneg %p51
        %p306 = scmp.lt.s32.totalorder %s24, 1
        %s307 = scalar_select %p306, %s24, 1
        %s308 = smul.addr %s307, 8
        %s309 = scalar_lea.vmem %s1, %s308
        %p310 = pneg %p80
        %p311 = pneg %p77
        %p312 = scmp.lt.s32.totalorder %s24, 1
        %s313 = scalar_select %p312, %s24, 1
        %s314 = smul.addr %s313, 48
        %s315 = smul.addr %s314, 8
        %s316 = scalar_lea.vmem %s2, %s315
        %p317 = pneg %p106
        %p318 = pneg %p103
        %p319 = scmp.lt.s32.totalorder %s24, 1
        %s320 = scalar_select %p319, %s24, 1
        %s321 = smul.addr %s320, 16
        %s322 = smul.addr %s321, 8
        %s323 = scalar_lea.vmem %s3, %s322
        %p324 = pneg %p132
        %p325 = pneg %p129
        %p326 = scmp.lt.s32.totalorder %s24, 1
        %s327 = scalar_select %p326, %s24, 1
        %s328 = scalar_lea.vmem %s4, %s327
        %p329 = pneg %p158
        %p330 = pneg %p155
        %p331 = pneg %p179
        %p332 = pneg %p176
        %p333 = pneg %p200
        %p334 = pneg %p197
        %p335 = pneg %p226
        %p336 = pneg %p223
        %p337 = scmp.lt.s32.totalorder %s24, 1
        %s338 = scalar_select %p337, %s24, 1
        %p339 = scmp.lt.s32.totalorder %s23, 0
        %s340 = scalar_select %p339, %s23, 0
        %s341 = sadd.s32 %s340, %s338
        %s342 = smul.addr %s341, 8
        %s343 = scalar_lea.vmem %s0, %s342
        %p344 = scmp.lt.s32.totalorder %s24, 1
        %s345 = scalar_select %p344, %s24, 1
        %s346 = smul.addr %s345, 8
        %s347 = scalar_lea.vmem %s1, %s346
        %p348 = scmp.lt.s32.totalorder %s24, 1
        %s349 = scalar_select %p348, %s24, 1
        %s350 = smul.addr %s349, 48
        %s351 = smul.addr %s350, 8
        %s352 = scalar_lea.vmem %s2, %s351
        %p353 = scmp.lt.s32.totalorder %s24, 1
        %s354 = scalar_select %p353, %s24, 1
        %s355 = smul.addr %s354, 16
        %s356 = smul.addr %s355, 8
        %s357 = scalar_lea.vmem %s3, %s356
        %p358 = scmp.lt.s32.totalorder %s24, 1
        %s359 = scalar_select %p358, %s24, 1
        %s360 = scalar_lea.vmem %s4, %s359
        %p361 = scmp.eq.s32.totalorder %s24, 0
        // Predicated region
        $region49: #{ngamoe_forward.1} parent=47 // pred_check
          %p362 = pneg %p361
        $region50: #{ngamoe_forward.1} parent=47 // pred_check_branch
          %364 = sbr.rel (%p362) target = $region52
        $region51: #{ngamoe_forward.1} parent=47 // pred_region
          %365 = vst [vmem:[#allocation2] sm:$0xff] 0.0
        $region52: #{ngamoe_forward.1} parent=47 // pred_fallthru
          _
        %v366 = vld [vmem:[%s343] sm:$0xff]
        %v367 = vld [vmem:[%s347] sm:$0x1]
        %v368 = vperm.slane %v367, 0
        %v369 = vmul.f32 %v366, %v368
        %v370 = vld [vmem:[%s347 + $0x1] sm:$0x1]
        %v371 = vperm.slane %v370, 0
        %v372 = vadd.f32 %v369, %v371
        %v373 = vmax.f32 %v372, 0.0
        %v374 = vld [vmem:[%s352] sm:$0xff]
        %v375 = vld [vmem:[%s352 + $0x8] sm:$0xff]
        %v376 = vld [vmem:[%s352 + $0x10] sm:$0xff]
        %v377 = vld [vmem:[%s352 + $0x18] sm:$0xff]
        %v378 = vld [vmem:[%s352 + $0x20] sm:$0xff]
        %v379 = vld [vmem:[%s352 + $0x28] sm:$0xff]
        %v380 = vld [vmem:[%s352 + $0x30] sm:$0xff]
        %v381 = vld [vmem:[%s352 + $0x38] sm:$0xff]
        %v382 = vld [vmem:[%s352 + $0x40] sm:$0xff]
        %v383 = vld [vmem:[%s352 + $0x48] sm:$0xff]
        %v384 = vld [vmem:[%s352 + $0x50] sm:$0xff]
        %v385 = vld [vmem:[%s352 + $0x58] sm:$0xff]
        %v386 = vld [vmem:[%s352 + $0x60] sm:$0xff]
        %v387 = vld [vmem:[%s352 + $0x68] sm:$0xff]
        %v388 = vld [vmem:[%s352 + $0x70] sm:$0xff]
        %v389 = vld [vmem:[%s352 + $0x78] sm:$0xff]
        %v390 = vld [vmem:[%s347 + $0x4] sm:$0x1]
        %v391 = vperm.slane %v390, 0
        %392 = vmatpush.msra.mxu0 %v389
        %393 = vmatpush.msra.mxu0 %v388
        %394 = vmatpush.msra.mxu0 %v387
        %395 = vmatpush.msra.mxu0 %v386
        %396 = vmatpush.msra.mxu0 %v385
        %397 = vmatpush.msra.mxu0 %v384
        %398 = vmatpush.msra.mxu0 %v383
        %399 = vmatpush.msra.mxu0 %v382
        %400 = vmatpush.msra.mxu0 %v381
        %401 = vmatpush.msra.mxu0 %v380
        %402 = vmatpush.msra.mxu0 %v379
        %403 = vmatpush.msra.mxu0 %v378
        %404 = vmatpush.msra.mxu0 %v377
        %405 = vmatpush.msra.mxu0 %v376
        %406 = vmatpush.msra.mxu0 %v375
        %407 = vmatpush.msra.mxu0 %v374
        %408 = vmatmul.f32.gmra.mxu0 %v373
        %v409 = vpop.f32.mrf.mxu0
        %v410 = vadd.f32 %v391, %v409
        %411 = vdwg.mxu0
        %v412 = vmax.f32 %v410, 0.0
        %s413 = scalar_lea.vmem %s352, 128
        %v414 = vld [vmem:[%s413] sm:$0xff]
        %v415 = vld [vmem:[%s413 + $0x8] sm:$0xff]
        %v416 = vld [vmem:[%s413 + $0x10] sm:$0xff]
        %v417 = vld [vmem:[%s413 + $0x18] sm:$0xff]
        %v418 = vld [vmem:[%s413 + $0x20] sm:$0xff]
        %v419 = vld [vmem:[%s413 + $0x28] sm:$0xff]
        %v420 = vld [vmem:[%s413 + $0x30] sm:$0xff]
        %v421 = vld [vmem:[%s413 + $0x38] sm:$0xff]
        %v422 = vld [vmem:[%s413 + $0x40] sm:$0xff]
        %v423 = vld [vmem:[%s413 + $0x48] sm:$0xff]
        %v424 = vld [vmem:[%s413 + $0x50] sm:$0xff]
        %v425 = vld [vmem:[%s413 + $0x58] sm:$0xff]
        %v426 = vld [vmem:[%s413 + $0x60] sm:$0xff]
        %v427 = vld [vmem:[%s413 + $0x68] sm:$0xff]
        %v428 = vld [vmem:[%s413 + $0x70] sm:$0xff]
        %v429 = vld [vmem:[%s413 + $0x78] sm:$0xff]
        %v430 = vld [vmem:[%s347 + $0x6] sm:$0x1]
        %v431 = vperm.slane %v430, 0
        %432 = vmatpush.msra.mxu0 %v429
        %433 = vmatpush.msra.mxu0 %v428
        %434 = vmatpush.msra.mxu0 %v427
        %435 = vmatpush.msra.mxu0 %v426
        %436 = vmatpush.msra.mxu0 %v425
        %437 = vmatpush.msra.mxu0 %v424
        %438 = vmatpush.msra.mxu0 %v423
        %439 = vmatpush.msra.mxu0 %v422
        %440 = vmatpush.msra.mxu0 %v421
        %441 = vmatpush.msra.mxu0 %v420
        %442 = vmatpush.msra.mxu0 %v419
        %443 = vmatpush.msra.mxu0 %v418
        %444 = vmatpush.msra.mxu0 %v417
        %445 = vmatpush.msra.mxu0 %v416
        %446 = vmatpush.msra.mxu0 %v415
        %447 = vmatpush.msra.mxu0 %v414
        %448 = vmatmul.f32.gmra.mxu0 %v412
        %v449 = vpop.f32.mrf.mxu0
        %v450 = vadd.f32 %v431, %v449
        %451 = vdwg.mxu0
        %v452 = vmax.f32 %v450, 0.0
        %v453 = vld [vmem:[%s347 + $0x2] sm:$0x1]
        %v454 = vperm.slane %v453, 0
        %v455 = vmul.f32 %v366, %v454
        %v456 = vld [vmem:[%s347 + $0x3] sm:$0x1]
        %v457 = vperm.slane %v456, 0
        %v458 = vadd.f32 %v455, %v457
        %v459 = vmax.f32 %v458, 0.0
        %s460 = scalar_lea.vmem %s352, 256
        %v461 = vld [vmem:[%s460] sm:$0xff]
        %v462 = vld [vmem:[%s460 + $0x8] sm:$0xff]
        %v463 = vld [vmem:[%s460 + $0x10] sm:$0xff]
        %v464 = vld [vmem:[%s460 + $0x18] sm:$0xff]
        %v465 = vld [vmem:[%s460 + $0x20] sm:$0xff]
        %v466 = vld [vmem:[%s460 + $0x28] sm:$0xff]
        %v467 = vld [vmem:[%s460 + $0x30] sm:$0xff]
        %v468 = vld [vmem:[%s460 + $0x38] sm:$0xff]
        %v469 = vld [vmem:[%s460 + $0x40] sm:$0xff]
        %v470 = vld [vmem:[%s460 + $0x48] sm:$0xff]
        %v471 = vld [vmem:[%s460 + $0x50] sm:$0xff]
        %v472 = vld [vmem:[%s460 + $0x58] sm:$0xff]
        %v473 = vld [vmem:[%s460 + $0x60] sm:$0xff]
        %v474 = vld [vmem:[%s460 + $0x68] sm:$0xff]
        %v475 = vld [vmem:[%s460 + $0x70] sm:$0xff]
        %v476 = vld [vmem:[%s460 + $0x78] sm:$0xff]
        %v477 = vld [vmem:[%s347 + $0x5] sm:$0x1]
        %v478 = vperm.slane %v477, 0
        %479 = vmatpush.msra.mxu0 %v476
        %480 = vmatpush.msra.mxu0 %v475
        %481 = vmatpush.msra.mxu0 %v474
        %482 = vmatpush.msra.mxu0 %v473
        %483 = vmatpush.msra.mxu0 %v472
        %484 = vmatpush.msra.mxu0 %v471
        %485 = vmatpush.msra.mxu0 %v470
        %486 = vmatpush.msra.mxu0 %v469
        %487 = vmatpush.msra.mxu0 %v468
        %488 = vmatpush.msra.mxu0 %v467
        %489 = vmatpush.msra.mxu0 %v466
        %490 = vmatpush.msra.mxu0 %v465
        %491 = vmatpush.msra.mxu0 %v464
        %492 = vmatpush.msra.mxu0 %v463
        %493 = vmatpush.msra.mxu0 %v462
        %494 = vmatpush.msra.mxu0 %v461
        %495 = vmatmul.f32.gmra.mxu0 %v459
        %v496 = vpop.f32.mrf.mxu0
        %v497 = vadd.f32 %v478, %v496
        %498 = vdwg.mxu0
        %v499 = vmax.f32 %v497, 0.0
        %v500 = vld [vmem:[%s357] sm:$0xff]
        %v501 = vld [vmem:[%s357 + $0x8] sm:$0xff]
        %v502 = vld [vmem:[%s357 + $0x10] sm:$0xff]
        %v503 = vld [vmem:[%s357 + $0x18] sm:$0xff]
        %v504 = vld [vmem:[%s357 + $0x20] sm:$0xff]
        %v505 = vld [vmem:[%s357 + $0x28] sm:$0xff]
        %v506 = vld [vmem:[%s357 + $0x30] sm:$0xff]
        %v507 = vld [vmem:[%s357 + $0x38] sm:$0xff]
        %v508 = vld [vmem:[%s357 + $0x40] sm:$0xff]
        %v509 = vld [vmem:[%s357 + $0x48] sm:$0xff]
        %v510 = vld [vmem:[%s357 + $0x50] sm:$0xff]
        %v511 = vld [vmem:[%s357 + $0x58] sm:$0xff]
        %v512 = vld [vmem:[%s357 + $0x60] sm:$0xff]
        %v513 = vld [vmem:[%s357 + $0x68] sm:$0xff]
        %v514 = vld [vmem:[%s357 + $0x70] sm:$0xff]
        %v515 = vld [vmem:[%s357 + $0x78] sm:$0xff]
        %v516 = vld [vmem:[%s360] sm:$0x1]
        %v518 = vperm.slane %v516, 0
        %520 = vmatpush.msra.mxu0 %v515
        %521 = vmatpush.msra.mxu0 %v514
        %522 = vmatpush.msra.mxu0 %v513
        %523 = vmatpush.msra.mxu0 %v512
        %524 = vmatpush.msra.mxu0 %v511
        %525 = vmatpush.msra.mxu0 %v510
        %526 = vmatpush.msra.mxu0 %v509
        %527 = vmatpush.msra.mxu0 %v508
        %528 = vmatpush.msra.mxu0 %v507
        %529 = vmatpush.msra.mxu0 %v506
        %530 = vmatpush.msra.mxu0 %v505
        %531 = vmatpush.msra.mxu0 %v504
        %532 = vmatpush.msra.mxu0 %v503
        %533 = vmatpush.msra.mxu0 %v502
        %534 = vmatpush.msra.mxu0 %v501
        %535 = vmatpush.msra.mxu0 %v500
        %536 = vmatmul.f32.gmra.mxu0 %v499
        %v537 = vpop.f32.mrf.mxu0
        %v538 = vadd.f32 %v518, %v537
        %539 = vdwg.mxu0
        %v540 = vmax.f32 %v538, 0.0
        %v541 = vld [vmem:[%s5] sm:$0xff]
        %v542 = vld [vmem:[%s5 + $0x8] sm:$0xff]
        %v543 = vld [vmem:[%s5 + $0x10] sm:$0xff]
        %v544 = vld [vmem:[%s5 + $0x18] sm:$0xff]
        %v545 = vld [vmem:[%s5 + $0x20] sm:$0xff]
        %v546 = vld [vmem:[%s5 + $0x28] sm:$0xff]
        %v547 = vld [vmem:[%s5 + $0x30] sm:$0xff]
        %v548 = vld [vmem:[%s5 + $0x38] sm:$0xff]
        %v549 = vld [vmem:[%s5 + $0x40] sm:$0xff]
        %v550 = vld [vmem:[%s5 + $0x48] sm:$0xff]
        %v551 = vld [vmem:[%s5 + $0x50] sm:$0xff]
        %v552 = vld [vmem:[%s5 + $0x58] sm:$0xff]
        %v553 = vld [vmem:[%s5 + $0x60] sm:$0xff]
        %v554 = vld [vmem:[%s5 + $0x68] sm:$0xff]
        %v555 = vld [vmem:[%s5 + $0x70] sm:$0xff]
        %v556 = vld [vmem:[%s5 + $0x78] sm:$0xff]
        %557 = vmatpush.msra.mxu0 %v556
        %558 = vmatpush.msra.mxu0 %v555
        %559 = vmatpush.msra.mxu0 %v554
        %560 = vmatpush.msra.mxu0 %v553
        %561 = vmatpush.msra.mxu0 %v552
        %562 = vmatpush.msra.mxu0 %v551
        %563 = vmatpush.msra.mxu0 %v550
        %564 = vmatpush.msra.mxu0 %v549
        %565 = vmatpush.msra.mxu0 %v548
        %566 = vmatpush.msra.mxu0 %v547
        %567 = vmatpush.msra.mxu0 %v546
        %568 = vmatpush.msra.mxu0 %v545
        %569 = vmatpush.msra.mxu0 %v544
        %570 = vmatpush.msra.mxu0 %v543
        %571 = vmatpush.msra.mxu0 %v542
        %572 = vmatpush.msra.mxu0 %v541
        %573 = vmatmul.f32.gmra.mxu0 %v452
        %v574 = vpop.f32.mrf.mxu0
        %v575 = vadd.f32 0.0, %v574
        %576 = vdwg.mxu0
        %v577 = vld [vmem:[#allocation2] sm:$0xff]
        %v578 = vmul.f32 %v575, %v540
        %v579 = vld [vmem:[%s6] sm:$0xff]
        %v580 = vld [vmem:[%s6 + $0x8] sm:$0xff]
        %v581 = vld [vmem:[%s6 + $0x10] sm:$0xff]
        %v582 = vld [vmem:[%s6 + $0x18] sm:$0xff]
        %v583 = vld [vmem:[%s6 + $0x20] sm:$0xff]
        %v584 = vld [vmem:[%s6 + $0x28] sm:$0xff]
        %v585 = vld [vmem:[%s6 + $0x30] sm:$0xff]
        %v586 = vld [vmem:[%s6 + $0x38] sm:$0xff]
        %v587 = vld [vmem:[%s6 + $0x40] sm:$0xff]
        %v588 = vld [vmem:[%s6 + $0x48] sm:$0xff]
        %v589 = vld [vmem:[%s6 + $0x50] sm:$0xff]
        %v590 = vld [vmem:[%s6 + $0x58] sm:$0xff]
        %v591 = vld [vmem:[%s6 + $0x60] sm:$0xff]
        %v592 = vld [vmem:[%s6 + $0x68] sm:$0xff]
        %v593 = vld [vmem:[%s6 + $0x70] sm:$0xff]
        %v594 = vld [vmem:[%s6 + $0x78] sm:$0xff]
        %595 = vmatpush.msra.mxu0 %v594
        %596 = vmatpush.msra.mxu0 %v593
        %597 = vmatpush.msra.mxu0 %v592
        %598 = vmatpush.msra.mxu0 %v591
        %599 = vmatpush.msra.mxu0 %v590
        %600 = vmatpush.msra.mxu0 %v589
        %601 = vmatpush.msra.mxu0 %v588
        %602 = vmatpush.msra.mxu0 %v587
        %603 = vmatpush.msra.mxu0 %v586
        %604 = vmatpush.msra.mxu0 %v585
        %605 = vmatpush.msra.mxu0 %v584
        %606 = vmatpush.msra.mxu0 %v583
        %607 = vmatpush.msra.mxu0 %v582
        %608 = vmatpush.msra.mxu0 %v581
        %609 = vmatpush.msra.mxu0 %v580
        %610 = vmatpush.msra.mxu0 %v579
        %611 = vmatmul.f32.gmra.mxu0 %v578
        %v612 = vpop.f32.mrf.mxu0
        %v613 = vadd.f32 0.0, %v612
        %614 = vdwg.mxu0
        %v615 = vadd.f32 %v577, %v613
        %616 = vst [vmem:[#allocation2] sm:$0xff] %v615
        // Predicated region
        $region53: #{ngamoe_forward.1} parent=47 // pred_check
          %p617 = pneg %p223
        $region54: #{ngamoe_forward.1} parent=47 // pred_check_branch
          %619 = sbr.rel (%p617) target = $region56
        $region55: #{ngamoe_forward.1} parent=47 // pred_region
          %621 = vsyncadd [#allocation3], 0
          %s622 = smul.addr %s23, 8
          %s623 = scalar_lea.hbm %s7, %s622
          %s625 = sshll.u32 [#allocation2], 4
          %s626 = int_to_ptr.vmem [resolvable:$true] %s625
          %s627 = sshll.u32 %s623, 4
          %s628 = int_to_ptr.hbm [resolvable:$true] %s627
          %630 = dma.vmem_to_hbm [thread:$0]  %s626, 128, %s628, [#allocation3]
        $region56: #{ngamoe_forward.1} parent=47 // pred_fallthru
          _
        // Predicated region
        $region57: #{ngamoe_forward.1} parent=47 // pred_check
          %p631 = pneg %p223
        $region58: #{ngamoe_forward.1} parent=47 // pred_check_branch
          %633 = sbr.rel (%p631) target = $region60
        $region59: #{ngamoe_forward.1} parent=47 // pred_region
          %635 = dma.done [#allocation3], 128
        $region60: #{ngamoe_forward.1} parent=47 // pred_fallthru
          _
      $region48: #{ngamoe_forward.1} parent=5 // pred_fallthru
        _
      %p636 = scmp.le.s32.totalorder 2, %s14
      // Predicated region
      $region61: #{ngamoe_forward.1} parent=5 // pred_check
        %p637 = pneg %p636
      $region62: #{ngamoe_forward.1} parent=5 // pred_check_branch
        %639 = sbr.rel (%p637) target = $region64
      $region63: #{ngamoe_forward.1} parent=5 // pred_region
        %s640 = ssub.s32 %s14, 2
      $region64: #{ngamoe_forward.1} parent=5 // pred_fallthru
        _
    $region6: #{ngamoe_forward.1} parent=1 // loop_footer
      %s18 = sadd.s32 1, %s14
    $region7: #{ngamoe_forward.1} parent=1 // loop_footer_branch
      %13 = sbr.rel target = $region3
    $region8: #{ngamoe_forward.1} parent=1 // loop_exit
      _
    %641 = vsyncpa [#allocation3], 1
    %s642 = scalar_lea.sflag [#allocation3], 1
    %643 = vsyncpa %s642, 1

</llo_original>
